<compile_context>
chip_gen: v7x
topology: tpu7x:2x2x1
jax: 0.10.0
libtpu: 0.0.40
codegen_flags: <defaults>
</compile_context>

<pallas_src>
import functools

import jax
import jax.numpy as jnp
from jax.experimental import pallas as pl
from jax.experimental.pallas import tpu as pltpu


def _round_up(x, m):
    return (x + m - 1) // m * m


# ---------------------------------------------------------------------------
# Pass 1: 3x3 conv (im2col + single MXU matmul) + per-tile channel partials.
# ---------------------------------------------------------------------------
def _conv_stats_kernel(*refs, stride, rb, w_out, cout_p, has_halo):
    """Refs:
      x_main : (1, rb*stride [or H+2], W+2, Cin_p)  padded input rows for the tile
      x_halo : (1, 3-stride, W+2, Cin_p)            bottom halo rows (if has_halo)
      w      : (9*Cin_p, Cout_p)                    weights, (ky,kx,ci) flattened
      out    : (1, rb, w_out, Cout_p) f32           conv output tile
      stats  : (1, 1, 8, Cout_p) f32                row0 = sum, row1 = sum of squares
    """
    if has_halo:
        xm_ref, xh_ref, w_ref, o_ref, st_ref = refs
        xb = jnp.concatenate([xm_ref[0], xh_ref[0]], axis=0)   # (rows, W+2, Cin_p)
    else:
        xm_ref, w_ref, o_ref, st_ref = refs
        xb = xm_ref[0]
    cin_p = xb.shape[-1]

    taps = []
    if stride == 1:
        for ky in range(3):
            rows = xb[ky:ky + rb, :, :]
            for kx in range(3):
                taps.append(rows[:, kx:kx + w_out, :])
    else:  # stride == 2: split even/odd columns once, then contiguous slices.
        xe = xb[:, 0::2, :]
        xo = xb[:, 1::2, :]
        hspan = 2 * (rb - 1) + 1
        for ky in range(3):
            rows_e = xe[ky:ky + hspan:2, :, :]
            rows_o = xo[ky:ky + hspan:2, :, :]
            taps.append(rows_e[:, 0:w_out, :])        # kx = 0
            taps.append(rows_o[:, 0:w_out, :])        # kx = 1
            taps.append(rows_e[:, 1:1 + w_out, :])    # kx = 2

    # im2col: (rb, w_out, 9*Cin_p) -> (M, K); one MXU matmul with K = 9*Cin_p.
    patches = jnp.concatenate(taps, axis=-1).reshape(rb * w_out, 9 * cin_p)
    acc = jax.lax.dot_general(
        patches, w_ref[...],
        dimension_numbers=(((1,), (0,)), ((), ())),
        preferred_element_type=jnp.float32)           # (M, Cout_p), f32 accumulate

    o_ref[...] = acc.reshape(1, rb, w_out, cout_p).astype(o_ref.dtype)

    s1 = jnp.sum(acc, axis=0, keepdims=True)          # (1, Cout_p)
    s2 = jnp.sum(acc * acc, axis=0, keepdims=True)    # (1, Cout_p)
    st_ref[...] = jnp.concatenate(
        [s1, s2, jnp.zeros((6, cout_p), jnp.float32)], axis=0
    ).reshape(1, 1, 8, cout_p)


# ---------------------------------------------------------------------------
# Pass 2: elementwise BN (precomputed per-channel scale/shift) + ReLU.
# ---------------------------------------------------------------------------
def _bn_relu_kernel(y_ref, scale_ref, shift_ref, o_ref):
    y = y_ref[...]                                    # (1, rb, w_out, Cout_p) f32
    scale = scale_ref[...].reshape(1, 1, 1, -1)
    shift = shift_ref[...].reshape(1, 1, 1, -1)
    o_ref[...] = jnp.maximum(y * scale + shift, 0.0).astype(o_ref.dtype)


def _pick_rows_per_block(h_out, wp, w_out, stride, cin_p, cout_p, in_itemsize,
                         budget_bytes=6 * 1024 * 1024):
    """Largest output-row block that divides h_out, keeps the halo BlockSpec
    expressible (even rb for stride=1) and fits a per-step VMEM budget that is
    safe under the default scoped-VMEM limits of v5e/v6e/v7x."""
    divisors = [d for d in range(1, h_out + 1) if h_out % d == 0]
    cands = [d for d in divisors if stride != 1 or d % 2 == 0]
    if not cands:                       # e.g. odd h_out with stride=1
        return h_out, False             # single block spanning the full padded H

    def footprint(rb):
        rows_in = rb * stride + (3 - stride)
        return (rows_in * wp * cin_p * in_itemsize        # input tile
                + rb * w_out * cout_p * 4                 # f32 conv tile
                + rb * w_out * 9 * cin_p * 4)             # im2col patches

    fitting = [d for d in cands if footprint(d) <= budget_bytes]
    return (max(fitting) if fitting else min(cands)), True


def mytconv_forward(x_nchw, weight, bias, gamma, beta, *, stride=1, eps=1e-5,
                    rows_per_block=None):
    """Forward pass of myTConv.

    x_nchw: (N, Cin, H, W); weight: (Cout, Cin, 3, 3) (PyTorch OIHW);
    gamma/beta: (Cout,) BatchNorm affine params.  BatchNorm uses batch statistics
    (PyTorch training-mode forward).  `bias` is accepted for API parity but is
    unused: the conv bias is cancelled exactly by the batch-stat mean subtraction.
    """
    if stride not in (1, 2):
        raise NotImplementedError("myTConv Pallas kernel supports stride 1 or 2")
    del bias                                            # cancelled by BN

    n, cin, h, w = x_nchw.shape
    cout = weight.shape[0]
    cin_p = _round_up(cin, 128)                         # lane-dense channels
    cout_p = _round_up(cout, 128)
    hp, wp = h + 2, w + 2
    h_out = (hp - 3) // stride + 1
    w_out = (wp - 3) // stride + 1

    # --- glue (layout + replication pad + channel zero-pad), plain XLA ---
    # TODO(synk): the NCHW<->NHWC transposes and the replication pad stay as XLA
    # ops; folding them into the kernel needs per-edge index clamping that a
    # BlockSpec index_map cannot express.
    x_nhwc = jnp.transpose(x_nchw, (0, 2, 3, 1))
    x_pad = jnp.pad(x_nhwc, ((0, 0), (1, 1), (1, 1), (0, 0)), mode="edge")
    if cin_p > cin:
        x_pad = jnp.pad(x_pad, ((0, 0), (0, 0), (0, 0), (0, cin_p - cin)))
    w_hwio = jnp.transpose(weight, (2, 3, 1, 0)).astype(x_pad.dtype)
    w_hwio = jnp.pad(w_hwio, ((0, 0), (0, 0), (0, cin_p - cin), (0, cout_p - cout)))
    w2 = w_hwio.reshape(9 * cin_p, cout_p)              # (ky,kx,ci) flattened

    # --- tiling ---
    if rows_per_block is None:
        rb, has_halo = _pick_rows_per_block(h_out, wp, w_out, stride, cin_p,
                                            cout_p, x_pad.dtype.itemsize)
    else:
        rb = int(rows_per_block)
        if h_out % rb != 0 or (stride == 1 and rb % 2 != 0):
            raise ValueError("rows_per_block must divide h_out "
                             "(and be even when stride == 1)")
        has_halo = True
    hb = h_out // rb
    rb_in = rb * stride if has_halo else hp
    parallel2 = pltpu.CompilerParams(
        dimension_semantics=("parallel", "parallel"))

    # --- pass 1: conv + partial channel statistics ---
    in_specs = [pl.BlockSpec((1, rb_in, wp, cin_p), lambda ni, hi: (ni, hi, 0, 0))]
    args = [x_pad]
    if has_halo:
        hal = 3 - stride
        halo_step = (rb * stride) // hal                # integer by construction
        in_specs.append(pl.BlockSpec(
            (1, hal, wp, cin_p),
            lambda ni, hi: (ni, (hi + 1) * halo_step, 0, 0)))
        args.append(x_pad)
    in_specs.append(pl.BlockSpec((9 * cin_p, cout_p), lambda ni, hi: (0, 0)))
    args.append(w2)

    conv_spec = pl.BlockSpec((1, rb, w_out, cout_p), lambda ni, hi: (ni, hi, 0, 0))
    stats_spec = pl.BlockSpec((1, 1, 8, cout_p), lambda ni, hi: (ni, hi, 0, 0))

    flops1 = 2 * n * h_out * w_out * 9 * cin_p * cout_p
    bytes1 = int(x_pad.size * x_pad.dtype.itemsize + w2.size * w2.dtype.itemsize
                 + n * h_out * w_out * cout_p * 4 + n * hb * 8 * cout_p * 4)
    conv_f32, stats = pl.pallas_call(
        functools.partial(_conv_stats_kernel, stride=stride, rb=rb, w_out=w_out,
                          cout_p=cout_p, has_halo=has_halo),
        grid=(n, hb),
        in_specs=in_specs,
        out_specs=(conv_spec, stats_spec),
        out_shape=(jax.ShapeDtypeStruct((n, h_out, w_out, cout_p), jnp.float32),
                   jax.ShapeDtypeStruct((n, hb, 8, cout_p), jnp.float32)),
        compiler_params=parallel2,
        cost_estimate=pl.CostEstimate(flops=flops1, transcendentals=0,
                                      bytes_accessed=bytes1),
    )(*args)

    # --- finalize BN statistics (tiny (Cout_p,) vectors, plain XLA) ---
    count = float(n * h_out * w_out)
    tot = jnp.sum(stats[:, :, 0, :], axis=(0, 1))
    tot_sq = jnp.sum(stats[:, :, 1, :], axis=(0, 1))
    mean = tot / count
    var = jnp.maximum(tot_sq / count - mean * mean, 0.0)     # biased var, like PyTorch BN
    inv = jax.lax.rsqrt(var + eps)
    g = jnp.pad(gamma.astype(jnp.float32), (0, cout_p - cout))
    b = jnp.pad(beta.astype(jnp.float32), (0, cout_p - cout))
    scale = (g * inv).reshape(1, cout_p)
    shift = (b - mean * g * inv).reshape(1, cout_p)

    # --- pass 2: elementwise BN + ReLU ---
    tile_spec = pl.BlockSpec((1, rb, w_out, cout_p), lambda ni, hi: (ni, hi, 0, 0))
    vec_spec = pl.BlockSpec((1, cout_p), lambda ni, hi: (0, 0))
    bytes2 = int(n * h_out * w_out * cout_p
                 * (4 + jnp.dtype(x_nchw.dtype).itemsize))
    out_nhwc = pl.pallas_call(
        _bn_relu_kernel,
        grid=(n, hb),
        in_specs=[tile_spec, vec_spec, vec_spec],
        out_specs=tile_spec,
        out_shape=jax.ShapeDtypeStruct((n, h_out, w_out, cout_p), x_nchw.dtype),
        compiler_params=parallel2,
        cost_estimate=pl.CostEstimate(flops=2 * n * h_out * w_out * cout_p,
                                      transcendentals=0, bytes_accessed=bytes2),
    )(conv_f32, scale, shift)

    # back to the module's NCHW layout, drop channel padding
    return jnp.transpose(out_nhwc[..., :cout], (0, 3, 1, 2))


def _reference(x_nchw, weight, bias, gamma, beta, *, stride=1, eps=1e-5):
    """Pure-JAX reference of the PyTorch forward (training-mode BN, with bias)."""
    x = jnp.transpose(x_nchw, (0, 2, 3, 1)).astype(jnp.float32)
    x = jnp.pad(x, ((0, 0), (1, 1), (1, 1), (0, 0)), mode="edge")
    wt = jnp.transpose(weight, (2, 3, 1, 0)).astype(jnp.float32)
    y = jax.lax.conv_general_dilated(
        x, wt, window_strides=(stride, stride), padding="VALID",
        dimension_numbers=("NHWC", "HWIO", "NHWC"),
        precision=jax.lax.Precision.HIGHEST)
    y = y + bias.reshape(1, 1, 1, -1)
    mean = jnp.mean(y, axis=(0, 1, 2), keepdims=True)
    var = jnp.mean((y - mean) ** 2, axis=(0, 1, 2), keepdims=True)
    y = (y - mean) * jax.lax.rsqrt(var + eps)
    y = y * gamma.reshape(1, 1, 1, -1) + beta.reshape(1, 1, 1, -1)
    y = jnp.maximum(y, 0.0)
    return jnp.transpose(y, (0, 3, 1, 2))


if __name__ == "__main__":
    # Small shapes consistent with the module (its defaults are 128/128; scaled down).
    N, Cin, H, W = 2, 8, 8, 8
    Cout = 8
    stride = 1

    key = jax.random.PRNGKey(0)
    k_x, k_w, k_b, k_g, k_be = jax.random.split(key, 5)
    x = jax.random.normal(k_x, (N, Cin, H, W), dtype=jnp.float32)
    fan_in = Cin * 3 * 3
    bound = 1.0 / (fan_in ** 0.5)
    weight = jax.random.uniform(k_w, (Cout, Cin, 3, 3), jnp.float32, -bound, bound)
    bias = jax.random.uniform(k_b, (Cout,), jnp.float32, -bound, bound)
    gamma = jax.random.uniform(k_g, (Cout,), jnp.float32, 0.5, 1.5)
    beta = jax.random.uniform(k_be, (Cout,), jnp.float32, -0.5, 0.5)

    ref = _reference(x, weight, bias, gamma, beta, stride=stride)

    # Exercise both tilings: explicit 2 row-blocks (halo path) and auto (single block).
    for rpb in (4, None):
        out = jax.block_until_ready(
            mytconv_forward(x, weight, bias, gamma, beta, stride=stride,
                            rows_per_block=rpb))
        assert out.shape == (N, Cout, H, W), out.shape
        err = float(jnp.max(jnp.abs(out - ref)))
        assert jnp.allclose(out, ref, atol=1e-4, rtol=1e-4), (rpb, err)

    print("KERNEL_OK")
</pallas_src>

<mosaic_0001>
module attributes {stable_mosaic.version = 11 : i64} {
  func.func @_conv_stats_kernel(%arg0: i32, %arg1: i32, %arg2: memref<1x4x10x128xf32, #tpu.memory_space<vmem>>, %arg3: memref<1x2x10x128xf32, #tpu.memory_space<vmem>>, %arg4: memref<1152x128xf32, #tpu.memory_space<vmem>>, %arg5: memref<1x4x8x128xf32, #tpu.memory_space<vmem>>, %arg6: memref<1x1x8x128xf32, #tpu.memory_space<vmem>>) attributes {dimension_semantics = [#tpu.dimension_semantics<parallel>, #tpu.dimension_semantics<parallel>], iteration_bounds = array<i64: 2, 2>, scalar_prefetch = 0 : i64, scratch_operands = 0 : i64, tpu.core_type = #tpu.core_type<tc>, window_params = [{transform_indices = @transform_0, window_bounds = array<i64: 1, 4, 10, 128>}, {transform_indices = @transform_1, window_bounds = array<i64: 1, 2, 10, 128>}, {pipeline_mode = #tpu.pipeline_mode<synchronous>, transform_indices = @transform_2, window_bounds = array<i64: 1152, 128>}, {transform_indices = @transform_3, window_bounds = array<i64: 1, 4, 8, 128>}, {transform_indices = @transform_4, window_bounds = array<i64: 1, 1, 8, 128>}]} {
    %c0 = arith.constant 0 : index
    %c0_0 = arith.constant 0 : index
    %c0_1 = arith.constant 0 : index
    %c0_2 = arith.constant 0 : index
    %0 = vector.load %arg2[%c0, %c0_0, %c0_1, %c0_2] : memref<1x4x10x128xf32, #tpu.memory_space<vmem>>, vector<1x4x10x128xf32>
    %1 = vector.shape_cast %0 : vector<1x4x10x128xf32> to vector<4x10x128xf32>
    %c0_3 = arith.constant 0 : index
    %c0_4 = arith.constant 0 : index
    %c0_5 = arith.constant 0 : index
    %c0_6 = arith.constant 0 : index
    %2 = vector.load %arg3[%c0_3, %c0_4, %c0_5, %c0_6] : memref<1x2x10x128xf32, #tpu.memory_space<vmem>>, vector<1x2x10x128xf32>
    %3 = vector.shape_cast %2 : vector<1x2x10x128xf32> to vector<2x10x128xf32>
    %4 = tpu.concatenate %1, %3 in 0 : vector<4x10x128xf32>, vector<2x10x128xf32> -> vector<6x10x128xf32>
    %5 = vector.extract_strided_slice %4 {offsets = [0, 0, 0], sizes = [4, 10, 128], strides = [1, 1, 1]} : vector<6x10x128xf32> to vector<4x10x128xf32>
    %6 = vector.extract_strided_slice %5 {offsets = [0, 0, 0], sizes = [4, 8, 128], strides = [1, 1, 1]} : vector<4x10x128xf32> to vector<4x8x128xf32>
    %7 = vector.extract_strided_slice %5 {offsets = [0, 1, 0], sizes = [4, 8, 128], strides = [1, 1, 1]} : vector<4x10x128xf32> to vector<4x8x128xf32>
    %8 = vector.extract_strided_slice %5 {offsets = [0, 2, 0], sizes = [4, 8, 128], strides = [1, 1, 1]} : vector<4x10x128xf32> to vector<4x8x128xf32>
    %9 = vector.extract_strided_slice %4 {offsets = [1, 0, 0], sizes = [4, 10, 128], strides = [1, 1, 1]} : vector<6x10x128xf32> to vector<4x10x128xf32>
    %10 = vector.extract_strided_slice %9 {offsets = [0, 0, 0], sizes = [4, 8, 128], strides = [1, 1, 1]} : vector<4x10x128xf32> to vector<4x8x128xf32>
    %11 = vector.extract_strided_slice %9 {offsets = [0, 1, 0], sizes = [4, 8, 128], strides = [1, 1, 1]} : vector<4x10x128xf32> to vector<4x8x128xf32>
    %12 = vector.extract_strided_slice %9 {offsets = [0, 2, 0], sizes = [4, 8, 128], strides = [1, 1, 1]} : vector<4x10x128xf32> to vector<4x8x128xf32>
    %13 = vector.extract_strided_slice %4 {offsets = [2, 0, 0], sizes = [4, 10, 128], strides = [1, 1, 1]} : vector<6x10x128xf32> to vector<4x10x128xf32>
    %14 = vector.extract_strided_slice %13 {offsets = [0, 0, 0], sizes = [4, 8, 128], strides = [1, 1, 1]} : vector<4x10x128xf32> to vector<4x8x128xf32>
    %15 = vector.extract_strided_slice %13 {offsets = [0, 1, 0], sizes = [4, 8, 128], strides = [1, 1, 1]} : vector<4x10x128xf32> to vector<4x8x128xf32>
    %16 = vector.extract_strided_slice %13 {offsets = [0, 2, 0], sizes = [4, 8, 128], strides = [1, 1, 1]} : vector<4x10x128xf32> to vector<4x8x128xf32>
    %17 = tpu.concatenate %6, %7, %8, %10, %11, %12, %14, %15, %16 in 2 : vector<4x8x128xf32>, vector<4x8x128xf32>, vector<4x8x128xf32>, vector<4x8x128xf32>, vector<4x8x128xf32>, vector<4x8x128xf32>, vector<4x8x128xf32>, vector<4x8x128xf32>, vector<4x8x128xf32> -> vector<4x8x1152xf32>
    %18 = vector.shape_cast %17 : vector<4x8x1152xf32> to vector<32x1152xf32>
    %c0_7 = arith.constant 0 : index
    %c0_8 = arith.constant 0 : index
    %19 = vector.load %arg4[%c0_7, %c0_8] : memref<1152x128xf32, #tpu.memory_space<vmem>>, vector<1152x128xf32>
    %cst = arith.constant dense<0.000000e+00> : vector<32x128xf32>
    %20 = tpu.matmul %18, %19, %cst {dimension_numbers = #tpu.dot_dimension_numbers<[1], [0], [0], [1], [0, 0, 1, 1], [], []>} : vector<32x1152xf32>, vector<1152x128xf32>, vector<32x128xf32> -> vector<32x128xf32>
    %21 = vector.shape_cast %20 : vector<32x128xf32> to vector<1x4x8x128xf32>
    %c0_9 = arith.constant 0 : index
    %c0_10 = arith.constant 0 : index
    %c0_11 = arith.constant 0 : index
    %c0_12 = arith.constant 0 : index
    %22 = vector.load %arg5[%c0_9, %c0_10, %c0_11, %c0_12] : memref<1x4x8x128xf32, #tpu.memory_space<vmem>>, vector<1x4x8x128xf32>
    tpu.vector_store %arg5[%c0_9, %c0_10, %c0_11, %c0_12], %21 {strides = array<i32>} : memref<1x4x8x128xf32, #tpu.memory_space<vmem>>, vector<1x4x8x128xf32>,
    %cst_13 = arith.constant dense<0.000000e+00> : vector<128xf32>
    %23 = vector.multi_reduction <add>, %20, %cst_13 [0] : vector<32x128xf32> to vector<128xf32>
    %24 = vector.shape_cast %23 : vector<128xf32> to vector<1x128xf32>
    %25 = arith.mulf %20, %20 : vector<32x128xf32>
    %cst_14 = arith.constant dense<0.000000e+00> : vector<128xf32>
    %26 = vector.multi_reduction <add>, %25, %cst_14 [0] : vector<32x128xf32> to vector<128xf32>
    %27 = vector.shape_cast %26 : vector<128xf32> to vector<1x128xf32>
    %cst_15 = arith.constant 0.000000e+00 : f32
    %28 = vector.broadcast %cst_15 : f32 to vector<6x128xf32>
    %29 = tpu.concatenate %24, %27, %28 in 0 : vector<1x128xf32>, vector<1x128xf32>, vector<6x128xf32> -> vector<8x128xf32>
    %30 = vector.shape_cast %29 : vector<8x128xf32> to vector<1x1x8x128xf32>
    %c0_16 = arith.constant 0 : index
    %c0_17 = arith.constant 0 : index
    %c0_18 = arith.constant 0 : index
    %c0_19 = arith.constant 0 : index
    %31 = vector.load %arg6[%c0_16, %c0_17, %c0_18, %c0_19] : memref<1x1x8x128xf32, #tpu.memory_space<vmem>>, vector<1x1x8x128xf32>
    tpu.vector_store %arg6[%c0_16, %c0_17, %c0_18, %c0_19], %30 {strides = array<i32>} : memref<1x1x8x128xf32, #tpu.memory_space<vmem>>, vector<1x1x8x128xf32>,
    return
  }
  func.func @transform_0(%arg0: i32, %arg1: i32) -> (i32, i32, i32, i32) {
    %c0_i32 = arith.constant 0 : i32
    %c0_i32_0 = arith.constant 0 : i32
    %c0_i32_1 = arith.constant 0 : i32
    return %arg0, %arg1, %c0_i32, %c0_i32_0 : i32, i32, i32, i32
  }
  func.func @transform_1(%arg0: i32, %arg1: i32) -> (i32, i32, i32, i32) {
    %c1_i32 = arith.constant 1 : i32
    %0 = arith.addi %arg1, %c1_i32 : i32
    %c2_i32 = arith.constant 2 : i32
    %1 = arith.muli %0, %c2_i32 : i32
    %c0_i32 = arith.constant 0 : i32
    %c0_i32_0 = arith.constant 0 : i32
    %c0_i32_1 = arith.constant 0 : i32
    return %arg0, %1, %c0_i32, %c0_i32_0 : i32, i32, i32, i32
  }
  func.func @transform_2(%arg0: i32, %arg1: i32) -> (i32, i32) {
    %c0_i32 = arith.constant 0 : i32
    %c0_i32_0 = arith.constant 0 : i32
    %c0_i32_1 = arith.constant 0 : i32
    return %c0_i32, %c0_i32_0 : i32, i32
  }
  func.func @transform_3(%arg0: i32, %arg1: i32) -> (i32, i32, i32, i32) {
    %c0_i32 = arith.constant 0 : i32
    %c0_i32_0 = arith.constant 0 : i32
    %c0_i32_1 = arith.constant 0 : i32
    return %arg0, %arg1, %c0_i32, %c0_i32_0 : i32, i32, i32, i32
  }
  func.func @transform_4(%arg0: i32, %arg1: i32) -> (i32, i32, i32, i32) {
    %c0_i32 = arith.constant 0 : i32
    %c0_i32_0 = arith.constant 0 : i32
    %c0_i32_1 = arith.constant 0 : i32
    return %arg0, %arg1, %c0_i32, %c0_i32_0 : i32, i32, i32, i32
  }
}

</mosaic_0001>

<llo_original>
// kernel: tpu_custom_call.1
$region0: #{tpu_custom_call.1}
  #allocation0 [shape = 'u32[]', space=smem, size = 0x4, offset = 0x4, fixed_abs, tag = 'smem constant byte address 0x4 - core index']
  #allocation1 [shape = 'u32[144,128]{1,0:T(1,128)}', space=vmem, size = 0x12000, scoped, tag = 'internal scratch']
  %s0 = inlined_call_operand.vmem [shape: f32[2,10,10,128], index: 0, kind: input, shape index: {}]
  %s1 = inlined_call_operand.vmem [shape: f32[2,10,10,128], index: 1, kind: input, shape index: {}]
  %s2 = inlined_call_operand.hbm [shape: f32[1152,128], index: 2, kind: input, shape index: {}]
  %s3 = inlined_call_operand.hbm [shape: f32[2,8,8,128], index: 3, kind: output, shape index: {0}]
  %s4 = inlined_call_operand.hbm [shape: f32[2,2,8,128], index: 4, kind: output, shape index: {1}]
  %5 = xla_tuple %s3, %s4
  %s6 = sld [smem:[#allocation0]]
  $region57: #{tpu_custom_call.1} parent=0
    _
  %s8 = ssub.s32 1, %s6
  %s9 = scalar_select 0, %s8, %s6
  $region1: #{tpu_custom_call.1} parent=0
    #allocation2 [shape = 'u8[589824]{0}', space=vmem, size = 0x90000, scoped, tag = 'input window, operand 2, single buffered']
    #allocation3 [shape = 's32[2]{0}', space=sflag, size = 0x8, scoped, tag = 'scoped memory for tpu_custom_call.1']
    #allocation4 [shape = 's32[2]{0}', space=sflag, size = 0x8, scoped, tag = 'scoped memory for tpu_custom_call.1']
    #allocation5 [shape = 'u8[32768]{0}', space=vmem, size = 0x8000, scoped, tag = 'output window, operand 0']
    #allocation6 [shape = 'u8[8192]{0}', space=vmem, size = 0x2000, scoped, tag = 'output window, operand 1']
    #allocation7 [shape = 's32[2]{0}', space=sflag, size = 0x8, scoped, tag = 'scoped memory for tpu_custom_call.1']
    %10 = vsyncpa [#allocation3], 0
    %11 = vsyncpa [#allocation4], 0
    %s12 = scalar_lea.sflag [#allocation4], 1
    %13 = vsyncpa %s12, 0
    %14 = vsyncpa [#allocation7], 0
    %s15 = scalar_lea.sflag [#allocation7], 1
    %16 = vsyncpa %s15, 0
    loop: start=0, step=1, limit=6
    $region2: #{tpu_custom_call.1} parent=1 // loop_pre_header
      _
    $region3: #{tpu_custom_call.1} parent=1 // loop_header
      %s18 = sphi 0, %s22
      %p19 = scmp.ge.s32.totalorder %s18, 6
      %s25 = sphi 0, %s37
      %s26 = sphi 0, %s33
      %s27 = sphi 0, %s25
      %s28 = sphi 0, %s26
      %s29 = sphi 0, %s27
      %s30 = sphi 0, %s28
      %s42 = sphi 0, %s44
      %s45 = sphi 0, %s42
      %s46 = sphi 0, %s45
      %s62 = sphi 0, %s46
      %s74 = sphi 0, %s76
      %s77 = sphi 0, %s74
      %s78 = sphi 0, %s77
      %s94 = sphi 0, %s78
      %s98 = sphi 0, %s98
      %s100 = sphi 0, %s98
      %s101 = sphi 0, %s100
      %s115 = sphi 0, %s101
      %s123 = sphi 0, %s125
      %s126 = sphi 0, %s123
      %s127 = sphi 0, %s126
      %s143 = sphi 0, %s127
      %s151 = sphi 0, %s153
      %s154 = sphi 0, %s151
      %s155 = sphi 0, %s154
      %s171 = sphi 0, %s155
    $region4: #{tpu_custom_call.1} parent=1 // loop_header_branch
      %21 = sbr.rel (%p19) target = $region8
    $region5: #{tpu_custom_call.1} parent=1 // loop_body
      %s23 = ssub.s32 %s18, 1
      %s24 = ssub.s32 %s18, 2
      %s31 = sadd.s32 1, %s26
      %p32 = scmp.ge.s32.totalorder %s31, 2
      %s33 = scalar_select %p32, 0, %s31
      %s34 = sadd.s32 1, %s25
      %s35 = scalar_select %p32, %s34, %s25
      %p36 = scmp.ge.s32.totalorder %s35, 2
      %s37 = scalar_select %p36, 0, %s35
      %s38 = ssub.s32 %s25, %s37
      %s39 = ssub.s32 %s26, %s33
      %s40 = sor.u32 %s38, %s39
      %p41 = scmp.eq.s32.totalorder %s40, 0
      %s43 = sadd.s32 %s42, 1
      %s44 = scalar_select %p41, %s42, %s43
      %p47 = pneg %p41
      %p48 = scmp.eq.s32.totalorder %s18, 3
      %p49 = por %p47, %p48
      %p50 = scmp.ne.s32.totalorder %s42, %s45
      %p51 = scmp.eq.s32.totalorder %s18, 0
      %p52 = por %p50, %p51
      %p53 = scmp.ne.s32.totalorder %s42, %s45
      %p54 = scmp.eq.s32.totalorder %s23, 3
      %p55 = por %p53, %p54
      %p56 = scmp.ne.s32.totalorder %s45, %s46
      %p57 = scmp.eq.s32.totalorder %s23, 0
      %p58 = por %p56, %p57
      %p59 = scmp.ne.s32.totalorder %s45, %s46
      %p60 = scmp.eq.s32.totalorder %s24, 3
      %p61 = por %p59, %p60
      %p63 = scmp.ne.s32.totalorder %s46, %s62
      %p64 = scmp.eq.s32.totalorder %s24, 0
      %p65 = por %p63, %p64
      %s66 = sadd.s32 %s26, 1
      %s67 = smul.u32 %s66, 2
      %s68 = sadd.s32 %s33, 1
      %s69 = smul.u32 %s68, 2
      %s70 = ssub.s32 %s25, %s37
      %s71 = ssub.s32 %s67, %s69
      %s72 = sor.u32 %s70, %s71
      %p73 = scmp.eq.s32.totalorder %s72, 0
      %s75 = sadd.s32 %s74, 1
      %s76 = scalar_select %p73, %s74, %s75
      %p79 = pneg %p73
      %p80 = scmp.eq.s32.totalorder %s18, 3
      %p81 = por %p79, %p80
      %p82 = scmp.ne.s32.totalorder %s74, %s77
      %p83 = scmp.eq.s32.totalorder %s18, 0
      %p84 = por %p82, %p83
      %p85 = scmp.ne.s32.totalorder %s74, %s77
      %p86 = scmp.eq.s32.totalorder %s23, 3
      %p87 = por %p85, %p86
      %p88 = scmp.ne.s32.totalorder %s77, %s78
      %p89 = scmp.eq.s32.totalorder %s23, 0
      %p90 = por %p88, %p89
      %p91 = scmp.ne.s32.totalorder %s77, %s78
      %p92 = scmp.eq.s32.totalorder %s24, 3
      %p93 = por %p91, %p92
      %p95 = scmp.ne.s32.totalorder %s78, %s94
      %p96 = scmp.eq.s32.totalorder %s24, 0
      %p97 = por %p95, %p96
      %s99 = sadd.s32 %s98, 1
      %p102 = scmp.eq.s32.totalorder %s18, 3
      %p103 = scmp.ne.s32.totalorder %s98, %s100
      %p104 = scmp.eq.s32.totalorder %s18, 0
      %p105 = por %p103, %p104
      %p106 = scmp.ne.s32.totalorder %s98, %s100
      %p107 = scmp.eq.s32.totalorder %s23, 3
      %p108 = por %p106, %p107
      %p109 = scmp.ne.s32.totalorder %s100, %s101
      %p110 = scmp.eq.s32.totalorder %s23, 0
      %p111 = por %p109, %p110
      %p112 = scmp.ne.s32.totalorder %s100, %s101
      %p113 = scmp.eq.s32.totalorder %s24, 3
      %p114 = por %p112, %p113
      %p116 = scmp.ne.s32.totalorder %s101, %s115
      %p117 = scmp.eq.s32.totalorder %s24, 0
      %p118 = por %p116, %p117
      %s119 = ssub.s32 %s25, %s37
      %s120 = ssub.s32 %s26, %s33
      %s121 = sor.u32 %s119, %s120
      %p122 = scmp.eq.s32.totalorder %s121, 0
      %s124 = sadd.s32 %s123, 1
      %s125 = scalar_select %p122, %s123, %s124
      %p128 = pneg %p122
      %p129 = scmp.eq.s32.totalorder %s18, 3
      %p130 = por %p128, %p129
      %p131 = scmp.ne.s32.totalorder %s123, %s126
      %p132 = scmp.eq.s32.totalorder %s18, 0
      %p133 = por %p131, %p132
      %p134 = scmp.ne.s32.totalorder %s123, %s126
      %p135 = scmp.eq.s32.totalorder %s23, 3
      %p136 = por %p134, %p135
      %p137 = scmp.ne.s32.totalorder %s126, %s127
      %p138 = scmp.eq.s32.totalorder %s23, 0
      %p139 = por %p137, %p138
      %p140 = scmp.ne.s32.totalorder %s126, %s127
      %p141 = scmp.eq.s32.totalorder %s24, 3
      %p142 = por %p140, %p141
      %p144 = scmp.ne.s32.totalorder %s127, %s143
      %p145 = scmp.eq.s32.totalorder %s24, 0
      %p146 = por %p144, %p145
      %s147 = ssub.s32 %s25, %s37
      %s148 = ssub.s32 %s26, %s33
      %s149 = sor.u32 %s147, %s148
      %p150 = scmp.eq.s32.totalorder %s149, 0
      %s152 = sadd.s32 %s151, 1
      %s153 = scalar_select %p150, %s151, %s152
      %p156 = pneg %p150
      %p157 = scmp.eq.s32.totalorder %s18, 3
      %p158 = por %p156, %p157
      %p159 = scmp.ne.s32.totalorder %s151, %s154
      %p160 = scmp.eq.s32.totalorder %s18, 0
      %p161 = por %p159, %p160
      %p162 = scmp.ne.s32.totalorder %s151, %s154
      %p163 = scmp.eq.s32.totalorder %s23, 3
      %p164 = por %p162, %p163
      %p165 = scmp.ne.s32.totalorder %s154, %s155
      %p166 = scmp.eq.s32.totalorder %s23, 0
      %p167 = por %p165, %p166
      %p168 = scmp.ne.s32.totalorder %s154, %s155
      %p169 = scmp.eq.s32.totalorder %s24, 3
      %p170 = por %p168, %p169
      %p172 = scmp.ne.s32.totalorder %s155, %s171
      %p173 = scmp.eq.s32.totalorder %s24, 0
      %p174 = por %p172, %p173
      %p175 = scmp.le.s32.totalorder 1, %s18
      %p176 = scmp.lt.s32.totalorder %s18, 5
      %p177 = pnand %p175, %p176
      %p178 = pneg %p177
      // Predicated region
      $region9: #{tpu_custom_call.1} parent=5 // pred_check
        _
      $region10: #{tpu_custom_call.1} parent=5 // pred_check_branch
        %180 = sbr.rel (%p177) target = $region12
      $region11: #{tpu_custom_call.1} parent=5 // pred_region
        %s181 = ssub.s32 %s18, 1
        // Predicated region
        $region13: #{tpu_custom_call.1} parent=11 // pred_check
          %p182 = pneg %p111
        $region14: #{tpu_custom_call.1} parent=11 // pred_check_branch
          %184 = sbr.rel (%p182) target = $region16
        $region15: #{tpu_custom_call.1} parent=11 // pred_region
          %s186 = ssub.s32 18432, 18432
          %187 = vsyncadd [#allocation3], %s186
          %s188 = sshll.u32 [#allocation2], 4
          %s189 = int_to_ptr.vmem [resolvable:$true] %s188
          %194 = dma.hbm_to_vmem [thread:$0]  %s2, 18432, %s189, [#allocation3], 128, 128, 8
        $region16: #{tpu_custom_call.1} parent=11 // pred_fallthru
          _
      $region12: #{tpu_custom_call.1} parent=5 // pred_fallthru
        _
      %p195 = scmp.lt.s32.totalorder %s18, 4
      // Predicated region
      $region17: #{tpu_custom_call.1} parent=5 // pred_check
        %p196 = pneg %p195
      $region18: #{tpu_custom_call.1} parent=5 // pred_check_branch
        %198 = sbr.rel (%p196) target = $region20
      $region19: #{tpu_custom_call.1} parent=5 // pred_region
        // Predicated region
        $region21: #{tpu_custom_call.1} parent=19 // pred_check
          %p199 = pneg %p52
        $region22: #{tpu_custom_call.1} parent=19 // pred_check_branch
          %201 = sbr.rel (%p199) target = $region24
        $region23: #{tpu_custom_call.1} parent=19 // pred_region
          %s202 = smul.u32 4, %s26
          %s203 = ssub.s32 10, %s202
          %p204 = scmp.lt.s32.totalorder %s203, 4
          %s205 = scalar_select %p204, %s203, 4
          %s206 = smul.u32 128, %s205
          %s207 = smul.u32 %s206, 2
          %p208 = scmp.lt.s32.totalorder %s25, 1
          %s209 = scalar_select %p208, %s25, 1
          %p210 = scmp.lt.s32.totalorder %s202, 9
          %s211 = scalar_select %p210, %s202, 9
          %s212 = smul.addr %s211, 2
          %s213 = smul.addr %s209, 20
          %s214 = sadd.s32 %s212, %s213
          %s215 = smul.addr %s214, 8
          %s216 = scalar_lea.vmem %s0, %s215
          %s217 = smul.u32 4, %s26
          %s218 = ssub.s32 10, %s217
          %p219 = scmp.lt.s32.totalorder %s218, 4
          %s220 = scalar_select %p219, %s218, 4
          %s221 = smul.u32 128, %s220
          %s222 = smul.u32 %s221, 2
        $region24: #{tpu_custom_call.1} parent=19 // pred_fallthru
          _
        // Predicated region
        $region25: #{tpu_custom_call.1} parent=19 // pred_check
          %p223 = pneg %p84
        $region26: #{tpu_custom_call.1} parent=19 // pred_check_branch
          %225 = sbr.rel (%p223) target = $region28
        $region27: #{tpu_custom_call.1} parent=19 // pred_region
          %s226 = sadd.s32 %s26, 1
          %s227 = smul.u32 %s226, 2
          %s228 = smul.u32 2, %s227
          %p229 = scmp.lt.s32.totalorder %s25, 1
          %s230 = scalar_select %p229, %s25, 1
          %p231 = scmp.lt.s32.totalorder %s228, 9
          %s232 = scalar_select %p231, %s228, 9
          %s233 = smul.addr %s232, 2
          %s234 = smul.addr %s230, 20
          %s235 = sadd.s32 %s233, %s234
          %s236 = smul.addr %s235, 8
          %s237 = scalar_lea.vmem %s1, %s236
          %s238 = sadd.s32 %s26, 1
          %s239 = smul.u32 %s238, 2
          %s240 = smul.u32 2, %s239
        $region28: #{tpu_custom_call.1} parent=19 // pred_fallthru
          _
      $region20: #{tpu_custom_call.1} parent=5 // pred_fallthru
        _
      %p241 = scmp.le.s32.totalorder 1, %s18
      %p242 = scmp.lt.s32.totalorder %s18, 5
      %p243 = pnand %p241, %p242
      %p244 = pneg %p243
      // Predicated region
      $region29: #{tpu_custom_call.1} parent=5 // pred_check
        _
      $region30: #{tpu_custom_call.1} parent=5 // pred_check_branch
        %246 = sbr.rel (%p243) target = $region32
      $region31: #{tpu_custom_call.1} parent=5 // pred_region
        %s247 = ssub.s32 %s18, 1
        // Predicated region
        $region33: #{tpu_custom_call.1} parent=31 // pred_check
          %p248 = pneg %p111
        $region34: #{tpu_custom_call.1} parent=31 // pred_check_branch
          %250 = sbr.rel (%p248) target = $region36
        $region35: #{tpu_custom_call.1} parent=31 // pred_region
          %251 = dma.done [#allocation3], 18432
        $region36: #{tpu_custom_call.1} parent=31 // pred_fallthru
          _
        %s252 = smul.u32 4, %s28
        %s253 = ssub.s32 10, %s252
        %p254 = scmp.lt.s32.totalorder %s253, 4
        %s255 = scalar_select %p254, %s253, 4
        %s256 = smul.u32 128, %s255
        %s257 = smul.u32 %s256, 2
        %p258 = scmp.lt.s32.totalorder %s27, 1
        %s259 = scalar_select %p258, %s27, 1
        %p260 = scmp.lt.s32.totalorder %s252, 9
        %s261 = scalar_select %p260, %s252, 9
        %s262 = smul.addr %s261, 2
        %s263 = smul.addr %s259, 20
        %s264 = sadd.s32 %s262, %s263
        %s265 = smul.addr %s264, 8
        %s266 = scalar_lea.vmem %s0, %s265
        %p267 = pneg %p58
        %p268 = pneg %p55
        %s269 = sadd.s32 %s28, 1
        %s270 = smul.u32 %s269, 2
        %s271 = smul.u32 2, %s270
        %p272 = scmp.lt.s32.totalorder %s27, 1
        %s273 = scalar_select %p272, %s27, 1
        %p274 = scmp.lt.s32.totalorder %s271, 9
        %s275 = scalar_select %p274, %s271, 9
        %s276 = smul.addr %s275, 2
        %s277 = smul.addr %s273, 20
        %s278 = sadd.s32 %s276, %s277
        %s279 = smul.addr %s278, 8
        %s280 = scalar_lea.vmem %s1, %s279
        %p281 = pneg %p90
        %p282 = pneg %p87
        %p283 = pneg %p111
        %p284 = pneg %p108
        %p285 = pneg %p139
        %p286 = pneg %p136
        %s287 = sand.u32 %s126, 1
        %s288 = scalar_lea.sflag [#allocation4], %s287
        %s289 = sand.u32 %s126, 1
        %s290 = smul.addr %s289, 32
        %s291 = scalar_lea.vmem [#allocation5], %s290
        %p292 = pneg %p167
        %p293 = pneg %p164
        %s294 = sand.u32 %s154, 1
        %s295 = scalar_lea.sflag [#allocation7], %s294
        %s296 = sand.u32 %s154, 1
        %s297 = smul.addr %s296, 8
        %s298 = scalar_lea.vmem [#allocation6], %s297
        %s299 = smul.u32 4, %s28
        %s300 = ssub.s32 10, %s299
        %p301 = scmp.lt.s32.totalorder %s300, 4
        %s302 = scalar_select %p301, %s300, 4
        %s303 = smul.u32 128, %s302
        %s304 = smul.u32 %s303, 2
        %p305 = scmp.lt.s32.totalorder %s27, 1
        %s306 = scalar_select %p305, %s27, 1
        %p307 = scmp.lt.s32.totalorder %s299, 9
        %s308 = scalar_select %p307, %s299, 9
        %s309 = smul.addr %s308, 2
        %s310 = smul.addr %s306, 20
        %s311 = sadd.s32 %s309, %s310
        %s312 = smul.addr %s311, 8
        %s313 = scalar_lea.vmem %s0, %s312
        %s314 = smul.u32 4, %s28
        %s315 = ssub.s32 10, %s314
        %p316 = scmp.lt.s32.totalorder %s315, 4
        %s317 = scalar_select %p316, %s315, 4
        %s318 = smul.u32 128, %s317
        %s319 = smul.u32 %s318, 2
        %s320 = sadd.s32 %s28, 1
        %s321 = smul.u32 %s320, 2
        %s322 = smul.u32 2, %s321
        %p323 = scmp.lt.s32.totalorder %s27, 1
        %s324 = scalar_select %p323, %s27, 1
        %p325 = scmp.lt.s32.totalorder %s322, 9
        %s326 = scalar_select %p325, %s322, 9
        %s327 = smul.addr %s326, 2
        %s328 = smul.addr %s324, 20
        %s329 = sadd.s32 %s327, %s328
        %s330 = smul.addr %s329, 8
        %s331 = scalar_lea.vmem %s1, %s330
        %s332 = sadd.s32 %s28, 1
        %s333 = smul.u32 %s332, 2
        %s334 = smul.u32 2, %s333
        %s335 = smul.u32 4, %s28
        %v336 = vld [vmem:[%s313] sm:$0xff]
        %v337 = vld [vmem:[%s313 + $0x8] sm:$0x3]
        %v338 = vld [vmem:[%s313 + $0x10] sm:$0xff]
        %v339 = vld [vmem:[%s313 + $0x18] sm:$0x3]
        %v340 = vld [vmem:[%s313 + $0x20] sm:$0xff]
        %v341 = vld [vmem:[%s313 + $0x28] sm:$0x3]
        %v342 = vld [vmem:[%s313 + $0x30] sm:$0xff]
        %v343 = vld [vmem:[%s313 + $0x38] sm:$0x3]
        %v344 = vld [vmem:[%s331] sm:$0xff]
        %v345 = vld [vmem:[%s331 + $0x8] sm:$0x3]
        %v346 = vld [vmem:[%s331 + $0x10] sm:$0xff]
        %v347 = vld [vmem:[%s331 + $0x18] sm:$0x3]
        %vm356 = vcmask 1046528
        %v357 = vrot.slane %v336, 1
        %v358 = vrot.slane %v337, 1
        %v359 = vsel %vm356, %v357, %v358
        %v360 = vrot.slane %v338, 1
        %v361 = vrot.slane %v339, 1
        %v362 = vsel %vm356, %v360, %v361
        %v363 = vrot.slane %v340, 1
        %v364 = vrot.slane %v341, 1
        %v365 = vsel %vm356, %v363, %v364
        %v366 = vrot.slane %v342, 1
        %v367 = vrot.slane %v343, 1
        %v368 = vsel %vm356, %v366, %v367
        %vm373 = vcmask 1045504
        %v374 = vrot.slane %v336, 2
        %v375 = vrot.slane %v337, 2
        %v376 = vsel %vm373, %v374, %v375
        %v377 = vrot.slane %v338, 2
        %v378 = vrot.slane %v339, 2
        %v379 = vsel %vm373, %v377, %v378
        %v380 = vrot.slane %v340, 2
        %v381 = vrot.slane %v341, 2
        %v382 = vsel %vm373, %v380, %v381
        %v383 = vrot.slane %v342, 2
        %v384 = vrot.slane %v343, 2
        %v385 = vsel %vm373, %v383, %v384
        %v392 = vrot.slane %v344, 1
        %v393 = vrot.slane %v345, 1
        %v394 = vsel %vm356, %v392, %v393
        %v396 = vrot.slane %v344, 2
        %v397 = vrot.slane %v345, 2
        %v398 = vsel %vm373, %v396, %v397
        %v402 = vrot.slane %v346, 1
        %v403 = vrot.slane %v347, 1
        %v404 = vsel %vm356, %v402, %v403
        %v406 = vrot.slane %v346, 2
        %v407 = vrot.slane %v347, 2
        %v408 = vsel %vm373, %v406, %v407
        %v410 = vld [vmem:[#allocation2] sm:$0xff]
        %v411 = vld [vmem:[#allocation2 + $0x8] sm:$0xff]
        %v412 = vld [vmem:[#allocation2 + $0x10] sm:$0xff]
        %v413 = vld [vmem:[#allocation2 + $0x18] sm:$0xff]
        %v414 = vld [vmem:[#allocation2 + $0x20] sm:$0xff]
        %v415 = vld [vmem:[#allocation2 + $0x28] sm:$0xff]
        %v416 = vld [vmem:[#allocation2 + $0x30] sm:$0xff]
        %v417 = vld [vmem:[#allocation2 + $0x38] sm:$0xff]
        %v418 = vld [vmem:[#allocation2 + $0x40] sm:$0xff]
        %v419 = vld [vmem:[#allocation2 + $0x48] sm:$0xff]
        %v420 = vld [vmem:[#allocation2 + $0x50] sm:$0xff]
        %v421 = vld [vmem:[#allocation2 + $0x58] sm:$0xff]
        %v422 = vld [vmem:[#allocation2 + $0x60] sm:$0xff]
        %v423 = vld [vmem:[#allocation2 + $0x68] sm:$0xff]
        %v424 = vld [vmem:[#allocation2 + $0x70] sm:$0xff]
        %v425 = vld [vmem:[#allocation2 + $0x78] sm:$0xff]
        %v426 = vld [vmem:[#allocation2 + $0x80] sm:$0xff]
        %v427 = vld [vmem:[#allocation2 + $0x88] sm:$0xff]
        %v428 = vld [vmem:[#allocation2 + $0x90] sm:$0xff]
        %v429 = vld [vmem:[#allocation2 + $0x98] sm:$0xff]
        %v430 = vld [vmem:[#allocation2 + $0xa0] sm:$0xff]
        %v431 = vld [vmem:[#allocation2 + $0xa8] sm:$0xff]
        %v432 = vld [vmem:[#allocation2 + $0xb0] sm:$0xff]
        %v433 = vld [vmem:[#allocation2 + $0xb8] sm:$0xff]
        %v434 = vld [vmem:[#allocation2 + $0xc0] sm:$0xff]
        %v435 = vld [vmem:[#allocation2 + $0xc8] sm:$0xff]
        %v436 = vld [vmem:[#allocation2 + $0xd0] sm:$0xff]
        %v437 = vld [vmem:[#allocation2 + $0xd8] sm:$0xff]
        %v438 = vld [vmem:[#allocation2 + $0xe0] sm:$0xff]
        %v439 = vld [vmem:[#allocation2 + $0xe8] sm:$0xff]
        %v440 = vld [vmem:[#allocation2 + $0xf0] sm:$0xff]
        %v441 = vld [vmem:[#allocation2 + $0xf8] sm:$0xff]
        %v442 = vld [vmem:[#allocation2 + $0x100] sm:$0xff]
        %v443 = vld [vmem:[#allocation2 + $0x108] sm:$0xff]
        %v444 = vld [vmem:[#allocation2 + $0x110] sm:$0xff]
        %v445 = vld [vmem:[#allocation2 + $0x118] sm:$0xff]
        %v446 = vld [vmem:[#allocation2 + $0x120] sm:$0xff]
        %v447 = vld [vmem:[#allocation2 + $0x128] sm:$0xff]
        %v448 = vld [vmem:[#allocation2 + $0x130] sm:$0xff]
        %v449 = vld [vmem:[#allocation2 + $0x138] sm:$0xff]
        %v450 = vld [vmem:[#allocation2 + $0x140] sm:$0xff]
        %v451 = vld [vmem:[#allocation2 + $0x148] sm:$0xff]
        %v452 = vld [vmem:[#allocation2 + $0x150] sm:$0xff]
        %v453 = vld [vmem:[#allocation2 + $0x158] sm:$0xff]
        %v454 = vld [vmem:[#allocation2 + $0x160] sm:$0xff]
        %v455 = vld [vmem:[#allocation2 + $0x168] sm:$0xff]
        %v456 = vld [vmem:[#allocation2 + $0x170] sm:$0xff]
        %v457 = vld [vmem:[#allocation2 + $0x178] sm:$0xff]
        %v458 = vld [vmem:[#allocation2 + $0x180] sm:$0xff]
        %v459 = vld [vmem:[#allocation2 + $0x188] sm:$0xff]
        %v460 = vld [vmem:[#allocation2 + $0x190] sm:$0xff]
        %v461 = vld [vmem:[#allocation2 + $0x198] sm:$0xff]
        %v462 = vld [vmem:[#allocation2 + $0x1a0] sm:$0xff]
        %v463 = vld [vmem:[#allocation2 + $0x1a8] sm:$0xff]
        %v464 = vld [vmem:[#allocation2 + $0x1b0] sm:$0xff]
        %v465 = vld [vmem:[#allocation2 + $0x1b8] sm:$0xff]
        %v466 = vld [vmem:[#allocation2 + $0x1c0] sm:$0xff]
        %v467 = vld [vmem:[#allocation2 + $0x1c8] sm:$0xff]
        %v468 = vld [vmem:[#allocation2 + $0x1d0] sm:$0xff]
        %v469 = vld [vmem:[#allocation2 + $0x1d8] sm:$0xff]
        %v470 = vld [vmem:[#allocation2 + $0x1e0] sm:$0xff]
        %v471 = vld [vmem:[#allocation2 + $0x1e8] sm:$0xff]
        %v472 = vld [vmem:[#allocation2 + $0x1f0] sm:$0xff]
        %v473 = vld [vmem:[#allocation2 + $0x1f8] sm:$0xff]
        %v474 = vld [vmem:[#allocation2 + $0x200] sm:$0xff]
        %v475 = vld [vmem:[#allocation2 + $0x208] sm:$0xff]
        %v476 = vld [vmem:[#allocation2 + $0x210] sm:$0xff]
        %v477 = vld [vmem:[#allocation2 + $0x218] sm:$0xff]
        %v478 = vld [vmem:[#allocation2 + $0x220] sm:$0xff]
        %v479 = vld [vmem:[#allocation2 + $0x228] sm:$0xff]
        %v480 = vld [vmem:[#allocation2 + $0x230] sm:$0xff]
        %v481 = vld [vmem:[#allocation2 + $0x238] sm:$0xff]
        %v482 = vld [vmem:[#allocation2 + $0x240] sm:$0xff]
        %v483 = vld [vmem:[#allocation2 + $0x248] sm:$0xff]
        %v484 = vld [vmem:[#allocation2 + $0x250] sm:$0xff]
        %v485 = vld [vmem:[#allocation2 + $0x258] sm:$0xff]
        %v486 = vld [vmem:[#allocation2 + $0x260] sm:$0xff]
        %v487 = vld [vmem:[#allocation2 + $0x268] sm:$0xff]
        %v488 = vld [vmem:[#allocation2 + $0x270] sm:$0xff]
        %v489 = vld [vmem:[#allocation2 + $0x278] sm:$0xff]
        %v490 = vld [vmem:[#allocation2 + $0x280] sm:$0xff]
        %v491 = vld [vmem:[#allocation2 + $0x288] sm:$0xff]
        %v492 = vld [vmem:[#allocation2 + $0x290] sm:$0xff]
        %v493 = vld [vmem:[#allocation2 + $0x298] sm:$0xff]
        %v494 = vld [vmem:[#allocation2 + $0x2a0] sm:$0xff]
        %v495 = vld [vmem:[#allocation2 + $0x2a8] sm:$0xff]
        %v496 = vld [vmem:[#allocation2 + $0x2b0] sm:$0xff]
        %v497 = vld [vmem:[#allocation2 + $0x2b8] sm:$0xff]
        %v498 = vld [vmem:[#allocation2 + $0x2c0] sm:$0xff]
        %v499 = vld [vmem:[#allocation2 + $0x2c8] sm:$0xff]
        %v500 = vld [vmem:[#allocation2 + $0x2d0] sm:$0xff]
        %v501 = vld [vmem:[#allocation2 + $0x2d8] sm:$0xff]
        %v502 = vld [vmem:[#allocation2 + $0x2e0] sm:$0xff]
        %v503 = vld [vmem:[#allocation2 + $0x2e8] sm:$0xff]
        %v504 = vld [vmem:[#allocation2 + $0x2f0] sm:$0xff]
        %v505 = vld [vmem:[#allocation2 + $0x2f8] sm:$0xff]
        %v506 = vld [vmem:[#allocation2 + $0x300] sm:$0xff]
        %v507 = vld [vmem:[#allocation2 + $0x308] sm:$0xff]
        %v508 = vld [vmem:[#allocation2 + $0x310] sm:$0xff]
        %v509 = vld [vmem:[#allocation2 + $0x318] sm:$0xff]
        %v510 = vld [vmem:[#allocation2 + $0x320] sm:$0xff]
        %v511 = vld [vmem:[#allocation2 + $0x328] sm:$0xff]
        %v512 = vld [vmem:[#allocation2 + $0x330] sm:$0xff]
        %v513 = vld [vmem:[#allocation2 + $0x338] sm:$0xff]
        %v514 = vld [vmem:[#allocation2 + $0x340] sm:$0xff]
        %v515 = vld [vmem:[#allocation2 + $0x348] sm:$0xff]
        %v516 = vld [vmem:[#allocation2 + $0x350] sm:$0xff]
        %v517 = vld [vmem:[#allocation2 + $0x358] sm:$0xff]
        %v518 = vld [vmem:[#allocation2 + $0x360] sm:$0xff]
        %v519 = vld [vmem:[#allocation2 + $0x368] sm:$0xff]
        %v520 = vld [vmem:[#allocation2 + $0x370] sm:$0xff]
        %v521 = vld [vmem:[#allocation2 + $0x378] sm:$0xff]
        %v522 = vld [vmem:[#allocation2 + $0x380] sm:$0xff]
        %v523 = vld [vmem:[#allocation2 + $0x388] sm:$0xff]
        %v524 = vld [vmem:[#allocation2 + $0x390] sm:$0xff]
        %v525 = vld [vmem:[#allocation2 + $0x398] sm:$0xff]
        %v526 = vld [vmem:[#allocation2 + $0x3a0] sm:$0xff]
        %v527 = vld [vmem:[#allocation2 + $0x3a8] sm:$0xff]
        %v528 = vld [vmem:[#allocation2 + $0x3b0] sm:$0xff]
        %v529 = vld [vmem:[#allocation2 + $0x3b8] sm:$0xff]
        %v530 = vld [vmem:[#allocation2 + $0x3c0] sm:$0xff]
        %v531 = vld [vmem:[#allocation2 + $0x3c8] sm:$0xff]
        %v532 = vld [vmem:[#allocation2 + $0x3d0] sm:$0xff]
        %v533 = vld [vmem:[#allocation2 + $0x3d8] sm:$0xff]
        %v534 = vld [vmem:[#allocation2 + $0x3e0] sm:$0xff]
        %v535 = vld [vmem:[#allocation2 + $0x3e8] sm:$0xff]
        %v536 = vld [vmem:[#allocation2 + $0x3f0] sm:$0xff]
        %v537 = vld [vmem:[#allocation2 + $0x3f8] sm:$0xff]
        %v538 = vld [vmem:[#allocation2 + $0x400] sm:$0xff]
        %v539 = vld [vmem:[#allocation2 + $0x408] sm:$0xff]
        %v540 = vld [vmem:[#allocation2 + $0x410] sm:$0xff]
        %v541 = vld [vmem:[#allocation2 + $0x418] sm:$0xff]
        %v542 = vld [vmem:[#allocation2 + $0x420] sm:$0xff]
        %v543 = vld [vmem:[#allocation2 + $0x428] sm:$0xff]
        %v544 = vld [vmem:[#allocation2 + $0x430] sm:$0xff]
        %v545 = vld [vmem:[#allocation2 + $0x438] sm:$0xff]
        %v546 = vld [vmem:[#allocation2 + $0x440] sm:$0xff]
        %v547 = vld [vmem:[#allocation2 + $0x448] sm:$0xff]
        %v548 = vld [vmem:[#allocation2 + $0x450] sm:$0xff]
        %v549 = vld [vmem:[#allocation2 + $0x458] sm:$0xff]
        %v550 = vld [vmem:[#allocation2 + $0x460] sm:$0xff]
        %v551 = vld [vmem:[#allocation2 + $0x468] sm:$0xff]
        %v552 = vld [vmem:[#allocation2 + $0x470] sm:$0xff]
        %v553 = vld [vmem:[#allocation2 + $0x478] sm:$0xff]
        %554 = vmatprep.subr.mxu0 0.0
        %555 = vmatpush1.msra.mxu0 %v410
        %556 = vmatprep.subr.mxu0 0.0
        %557 = vmatpush1.msra.mxu0 %v411
        %558 = vmatprep.subr.mxu0 0.0
        %559 = vmatpush1.msra.mxu0 %v412
        %560 = vmatprep.subr.mxu0 0.0
        %561 = vmatpush1.msra.mxu0 %v413
        %562 = vmatprep.subr.mxu0 0.0
        %563 = vmatpush1.msra.mxu0 %v414
        %564 = vmatprep.subr.mxu0 0.0
        %565 = vmatpush1.msra.mxu0 %v415
        %566 = vmatprep.subr.mxu0 0.0
        %567 = vmatpush1.msra.mxu0 %v416
        %568 = vmatprep.subr.mxu0 0.0
        %569 = vmatpush1.msra.mxu0 %v417
        %570 = vmatprep.subr.mxu0 0.0
        %571 = vmatpush1.msra.mxu0 %v418
        %572 = vmatprep.subr.mxu0 0.0
        %573 = vmatpush1.msra.mxu0 %v419
        %574 = vmatprep.subr.mxu0 0.0
        %575 = vmatpush1.msra.mxu0 %v420
        %576 = vmatprep.subr.mxu0 0.0
        %577 = vmatpush1.msra.mxu0 %v421
        %578 = vmatprep.subr.mxu0 0.0
        %579 = vmatpush1.msra.mxu0 %v422
        %580 = vmatprep.subr.mxu0 0.0
        %581 = vmatpush1.msra.mxu0 %v423
        %582 = vmatprep.subr.mxu0 0.0
        %583 = vmatpush1.msra.mxu0 %v424
        %584 = vmatprep.subr.mxu0 0.0
        %585 = vmatpush1.msra.mxu0 %v425
        %586 = vmatprep.subr.mxu0 0.0
        %587 = vmatpush1.msra.mxu0 %v426
        %588 = vmatprep.subr.mxu0 0.0
        %589 = vmatpush1.msra.mxu0 %v427
        %590 = vmatprep.subr.mxu0 0.0
        %591 = vmatpush1.msra.mxu0 %v428
        %592 = vmatprep.subr.mxu0 0.0
        %593 = vmatpush1.msra.mxu0 %v429
        %594 = vmatprep.subr.mxu0 0.0
        %595 = vmatpush1.msra.mxu0 %v430
        %596 = vmatprep.subr.mxu0 0.0
        %597 = vmatpush1.msra.mxu0 %v431
        %598 = vmatprep.subr.mxu0 0.0
        %599 = vmatpush1.msra.mxu0 %v432
        %600 = vmatprep.subr.mxu0 0.0
        %601 = vmatpush1.msra.mxu0 %v433
        %602 = vmatprep.subr.mxu0 0.0
        %603 = vmatpush1.msra.mxu0 %v434
        %604 = vmatprep.subr.mxu0 0.0
        %605 = vmatpush1.msra.mxu0 %v435
        %606 = vmatprep.subr.mxu0 0.0
        %607 = vmatpush1.msra.mxu0 %v436
        %608 = vmatprep.subr.mxu0 0.0
        %609 = vmatpush1.msra.mxu0 %v437
        %610 = vmatprep.subr.mxu0 0.0
        %611 = vmatpush1.msra.mxu0 %v438
        %612 = vmatprep.subr.mxu0 0.0
        %613 = vmatpush1.msra.mxu0 %v439
        %614 = vmatprep.subr.mxu0 0.0
        %615 = vmatpush1.msra.mxu0 %v440
        %616 = vmatprep.subr.mxu0 0.0
        %617 = vmatpush1.msra.mxu0 %v441
        %618 = vmatprep.mubr.f32.mxu0 %v359
        %619 = vmatmul.mubr.f32.gmra.mrb[0].mxu0 %v336
        %v620 = vpop.f32.mrb[0].mxu0
        %v621 = vadd.f32 0.0, %v620
        %v622 = vpop.f32.mrb[0].mxu0
        %623 = vmatprep.mubr.f32.mxu0 %v362
        %624 = vmatmul.mubr.f32.gmra.mrb[0].mxu0 %v338
        %v625 = vpop.f32.mrb[0].mxu0
        %v626 = vadd.f32 0.0, %v625
        %v627 = vpop.f32.mrb[0].mxu0
        %628 = vmatprep.mubr.f32.mxu0 %v365
        %629 = vmatmul.mubr.f32.gmra.mrb[0].mxu0 %v340
        %v630 = vpop.f32.mrb[0].mxu0
        %v631 = vadd.f32 0.0, %v630
        %v632 = vpop.f32.mrb[0].mxu0
        %633 = vmatprep.mubr.f32.mxu0 %v368
        %634 = vmatmul.mubr.f32.gmra.mrb[0].mxu0 %v342
        %v635 = vpop.f32.mrb[0].mxu0
        %v636 = vadd.f32 0.0, %v635
        %v637 = vpop.f32.mrb[0].mxu0
        %638 = vdwg.mxu0
        %639 = vmatprep.subr.mxu0 0.0
        %640 = vmatpush1.msra.mxu0 %v442
        %641 = vmatprep.subr.mxu0 0.0
        %642 = vmatpush1.msra.mxu0 %v443
        %643 = vmatprep.subr.mxu0 0.0
        %644 = vmatpush1.msra.mxu0 %v444
        %645 = vmatprep.subr.mxu0 0.0
        %646 = vmatpush1.msra.mxu0 %v445
        %647 = vmatprep.subr.mxu0 0.0
        %648 = vmatpush1.msra.mxu0 %v446
        %649 = vmatprep.subr.mxu0 0.0
        %650 = vmatpush1.msra.mxu0 %v447
        %651 = vmatprep.subr.mxu0 0.0
        %652 = vmatpush1.msra.mxu0 %v448
        %653 = vmatprep.subr.mxu0 0.0
        %654 = vmatpush1.msra.mxu0 %v449
        %655 = vmatprep.subr.mxu0 0.0
        %656 = vmatpush1.msra.mxu0 %v450
        %657 = vmatprep.subr.mxu0 0.0
        %658 = vmatpush1.msra.mxu0 %v451
        %659 = vmatprep.subr.mxu0 0.0
        %660 = vmatpush1.msra.mxu0 %v452
        %661 = vmatprep.subr.mxu0 0.0
        %662 = vmatpush1.msra.mxu0 %v453
        %663 = vmatprep.subr.mxu0 0.0
        %664 = vmatpush1.msra.mxu0 %v454
        %665 = vmatprep.subr.mxu0 0.0
        %666 = vmatpush1.msra.mxu0 %v455
        %667 = vmatprep.subr.mxu0 0.0
        %668 = vmatpush1.msra.mxu0 %v456
        %669 = vmatprep.subr.mxu0 0.0
        %670 = vmatpush1.msra.mxu0 %v457
        %671 = vmatprep.subr.mxu0 0.0
        %672 = vmatpush1.msra.mxu0 %v458
        %673 = vmatprep.subr.mxu0 0.0
        %674 = vmatpush1.msra.mxu0 %v459
        %675 = vmatprep.subr.mxu0 0.0
        %676 = vmatpush1.msra.mxu0 %v460
        %677 = vmatprep.subr.mxu0 0.0
        %678 = vmatpush1.msra.mxu0 %v461
        %679 = vmatprep.subr.mxu0 0.0
        %680 = vmatpush1.msra.mxu0 %v462
        %681 = vmatprep.subr.mxu0 0.0
        %682 = vmatpush1.msra.mxu0 %v463
        %683 = vmatprep.subr.mxu0 0.0
        %684 = vmatpush1.msra.mxu0 %v464
        %685 = vmatprep.subr.mxu0 0.0
        %686 = vmatpush1.msra.mxu0 %v465
        %687 = vmatprep.subr.mxu0 0.0
        %688 = vmatpush1.msra.mxu0 %v466
        %689 = vmatprep.subr.mxu0 0.0
        %690 = vmatpush1.msra.mxu0 %v467
        %691 = vmatprep.subr.mxu0 0.0
        %692 = vmatpush1.msra.mxu0 %v468
        %693 = vmatprep.subr.mxu0 0.0
        %694 = vmatpush1.msra.mxu0 %v469
        %695 = vmatprep.subr.mxu0 0.0
        %696 = vmatpush1.msra.mxu0 %v470
        %697 = vmatprep.subr.mxu0 0.0
        %698 = vmatpush1.msra.mxu0 %v471
        %699 = vmatprep.subr.mxu0 0.0
        %700 = vmatpush1.msra.mxu0 %v472
        %701 = vmatprep.subr.mxu0 0.0
        %702 = vmatpush1.msra.mxu0 %v473
        %703 = vmatprep.mubr.f32.mxu0 %v338
        %704 = vmatmul.mubr.f32.gmra.mrb[0].mxu0 %v376
        %v705 = vpop.f32.mrb[0].mxu0
        %v706 = vadd.f32 %v621, %v705
        %v707 = vpop.f32.mrb[0].mxu0
        %708 = vmatprep.mubr.f32.mxu0 %v340
        %709 = vmatmul.mubr.f32.gmra.mrb[0].mxu0 %v379
        %v710 = vpop.f32.mrb[0].mxu0
        %v711 = vadd.f32 %v626, %v710
        %v712 = vpop.f32.mrb[0].mxu0
        %713 = vmatprep.mubr.f32.mxu0 %v342
        %714 = vmatmul.mubr.f32.gmra.mrb[0].mxu0 %v382
        %v715 = vpop.f32.mrb[0].mxu0
        %v716 = vadd.f32 %v631, %v715
        %v717 = vpop.f32.mrb[0].mxu0
        %718 = vmatprep.mubr.f32.mxu0 %v344
        %719 = vmatmul.mubr.f32.gmra.mrb[0].mxu0 %v385
        %v720 = vpop.f32.mrb[0].mxu0
        %v721 = vadd.f32 %v636, %v720
        %v722 = vpop.f32.mrb[0].mxu0
        %723 = vdwg.mxu0
        %724 = vmatprep.subr.mxu0 0.0
        %725 = vmatpush1.msra.mxu0 %v474
        %726 = vmatprep.subr.mxu0 0.0
        %727 = vmatpush1.msra.mxu0 %v475
        %728 = vmatprep.subr.mxu0 0.0
        %729 = vmatpush1.msra.mxu0 %v476
        %730 = vmatprep.subr.mxu0 0.0
        %731 = vmatpush1.msra.mxu0 %v477
        %732 = vmatprep.subr.mxu0 0.0
        %733 = vmatpush1.msra.mxu0 %v478
        %734 = vmatprep.subr.mxu0 0.0
        %735 = vmatpush1.msra.mxu0 %v479
        %736 = vmatprep.subr.mxu0 0.0
        %737 = vmatpush1.msra.mxu0 %v480
        %738 = vmatprep.subr.mxu0 0.0
        %739 = vmatpush1.msra.mxu0 %v481
        %740 = vmatprep.subr.mxu0 0.0
        %741 = vmatpush1.msra.mxu0 %v482
        %742 = vmatprep.subr.mxu0 0.0
        %743 = vmatpush1.msra.mxu0 %v483
        %744 = vmatprep.subr.mxu0 0.0
        %745 = vmatpush1.msra.mxu0 %v484
        %746 = vmatprep.subr.mxu0 0.0
        %747 = vmatpush1.msra.mxu0 %v485
        %748 = vmatprep.subr.mxu0 0.0
        %749 = vmatpush1.msra.mxu0 %v486
        %750 = vmatprep.subr.mxu0 0.0
        %751 = vmatpush1.msra.mxu0 %v487
        %752 = vmatprep.subr.mxu0 0.0
        %753 = vmatpush1.msra.mxu0 %v488
        %754 = vmatprep.subr.mxu0 0.0
        %755 = vmatpush1.msra.mxu0 %v489
        %756 = vmatprep.subr.mxu0 0.0
        %757 = vmatpush1.msra.mxu0 %v490
        %758 = vmatprep.subr.mxu0 0.0
        %759 = vmatpush1.msra.mxu0 %v491
        %760 = vmatprep.subr.mxu0 0.0
        %761 = vmatpush1.msra.mxu0 %v492
        %762 = vmatprep.subr.mxu0 0.0
        %763 = vmatpush1.msra.mxu0 %v493
        %764 = vmatprep.subr.mxu0 0.0
        %765 = vmatpush1.msra.mxu0 %v494
        %766 = vmatprep.subr.mxu0 0.0
        %767 = vmatpush1.msra.mxu0 %v495
        %768 = vmatprep.subr.mxu0 0.0
        %769 = vmatpush1.msra.mxu0 %v496
        %770 = vmatprep.subr.mxu0 0.0
        %771 = vmatpush1.msra.mxu0 %v497
        %772 = vmatprep.subr.mxu0 0.0
        %773 = vmatpush1.msra.mxu0 %v498
        %774 = vmatprep.subr.mxu0 0.0
        %775 = vmatpush1.msra.mxu0 %v499
        %776 = vmatprep.subr.mxu0 0.0
        %777 = vmatpush1.msra.mxu0 %v500
        %778 = vmatprep.subr.mxu0 0.0
        %779 = vmatpush1.msra.mxu0 %v501
        %780 = vmatprep.subr.mxu0 0.0
        %781 = vmatpush1.msra.mxu0 %v502
        %782 = vmatprep.subr.mxu0 0.0
        %783 = vmatpush1.msra.mxu0 %v503
        %784 = vmatprep.subr.mxu0 0.0
        %785 = vmatpush1.msra.mxu0 %v504
        %786 = vmatprep.subr.mxu0 0.0
        %787 = vmatpush1.msra.mxu0 %v505
        %788 = vmatprep.mubr.f32.mxu0 %v379
        %789 = vmatmul.mubr.f32.gmra.mrb[0].mxu0 %v362
        %v790 = vpop.f32.mrb[0].mxu0
        %v791 = vadd.f32 %v706, %v790
        %v792 = vpop.f32.mrb[0].mxu0
        %793 = vmatprep.mubr.f32.mxu0 %v382
        %794 = vmatmul.mubr.f32.gmra.mrb[0].mxu0 %v365
        %v795 = vpop.f32.mrb[0].mxu0
        %v796 = vadd.f32 %v711, %v795
        %v797 = vpop.f32.mrb[0].mxu0
        %798 = vmatprep.mubr.f32.mxu0 %v385
        %799 = vmatmul.mubr.f32.gmra.mrb[0].mxu0 %v368
        %v800 = vpop.f32.mrb[0].mxu0
        %v801 = vadd.f32 %v716, %v800
        %v802 = vpop.f32.mrb[0].mxu0
        %803 = vmatprep.mubr.f32.mxu0 %v398
        %804 = vmatmul.mubr.f32.gmra.mrb[0].mxu0 %v394
        %v805 = vpop.f32.mrb[0].mxu0
        %v806 = vadd.f32 %v721, %v805
        %v807 = vpop.f32.mrb[0].mxu0
        %808 = vdwg.mxu0
        %809 = vmatprep.subr.mxu0 0.0
        %810 = vmatpush1.msra.mxu0 %v506
        %811 = vmatprep.subr.mxu0 0.0
        %812 = vmatpush1.msra.mxu0 %v507
        %813 = vmatprep.subr.mxu0 0.0
        %814 = vmatpush1.msra.mxu0 %v508
        %815 = vmatprep.subr.mxu0 0.0
        %816 = vmatpush1.msra.mxu0 %v509
        %817 = vmatprep.subr.mxu0 0.0
        %818 = vmatpush1.msra.mxu0 %v510
        %819 = vmatprep.subr.mxu0 0.0
        %820 = vmatpush1.msra.mxu0 %v511
        %821 = vmatprep.subr.mxu0 0.0
        %822 = vmatpush1.msra.mxu0 %v512
        %823 = vmatprep.subr.mxu0 0.0
        %824 = vmatpush1.msra.mxu0 %v513
        %825 = vmatprep.subr.mxu0 0.0
        %826 = vmatpush1.msra.mxu0 %v514
        %827 = vmatprep.subr.mxu0 0.0
        %828 = vmatpush1.msra.mxu0 %v515
        %829 = vmatprep.subr.mxu0 0.0
        %830 = vmatpush1.msra.mxu0 %v516
        %831 = vmatprep.subr.mxu0 0.0
        %832 = vmatpush1.msra.mxu0 %v517
        %833 = vmatprep.subr.mxu0 0.0
        %834 = vmatpush1.msra.mxu0 %v518
        %835 = vmatprep.subr.mxu0 0.0
        %836 = vmatpush1.msra.mxu0 %v519
        %837 = vmatprep.subr.mxu0 0.0
        %838 = vmatpush1.msra.mxu0 %v520
        %839 = vmatprep.subr.mxu0 0.0
        %840 = vmatpush1.msra.mxu0 %v521
        %841 = vmatprep.subr.mxu0 0.0
        %842 = vmatpush1.msra.mxu0 %v522
        %843 = vmatprep.subr.mxu0 0.0
        %844 = vmatpush1.msra.mxu0 %v523
        %845 = vmatprep.subr.mxu0 0.0
        %846 = vmatpush1.msra.mxu0 %v524
        %847 = vmatprep.subr.mxu0 0.0
        %848 = vmatpush1.msra.mxu0 %v525
        %849 = vmatprep.subr.mxu0 0.0
        %850 = vmatpush1.msra.mxu0 %v526
        %851 = vmatprep.subr.mxu0 0.0
        %852 = vmatpush1.msra.mxu0 %v527
        %853 = vmatprep.subr.mxu0 0.0
        %854 = vmatpush1.msra.mxu0 %v528
        %855 = vmatprep.subr.mxu0 0.0
        %856 = vmatpush1.msra.mxu0 %v529
        %857 = vmatprep.subr.mxu0 0.0
        %858 = vmatpush1.msra.mxu0 %v530
        %859 = vmatprep.subr.mxu0 0.0
        %860 = vmatpush1.msra.mxu0 %v531
        %861 = vmatprep.subr.mxu0 0.0
        %862 = vmatpush1.msra.mxu0 %v532
        %863 = vmatprep.subr.mxu0 0.0
        %864 = vmatpush1.msra.mxu0 %v533
        %865 = vmatprep.subr.mxu0 0.0
        %866 = vmatpush1.msra.mxu0 %v534
        %867 = vmatprep.subr.mxu0 0.0
        %868 = vmatpush1.msra.mxu0 %v535
        %869 = vmatprep.subr.mxu0 0.0
        %870 = vmatpush1.msra.mxu0 %v536
        %871 = vmatprep.subr.mxu0 0.0
        %872 = vmatpush1.msra.mxu0 %v537
        %873 = vmatprep.mubr.f32.mxu0 %v365
        %874 = vmatmul.mubr.f32.gmra.mrb[0].mxu0 %v340
        %v875 = vpop.f32.mrb[0].mxu0
        %v876 = vadd.f32 %v791, %v875
        %v877 = vpop.f32.mrb[0].mxu0
        %878 = vmatprep.mubr.f32.mxu0 %v368
        %879 = vmatmul.mubr.f32.gmra.mrb[0].mxu0 %v342
        %v880 = vpop.f32.mrb[0].mxu0
        %v881 = vadd.f32 %v796, %v880
        %v882 = vpop.f32.mrb[0].mxu0
        %883 = vmatprep.mubr.f32.mxu0 %v394
        %884 = vmatmul.mubr.f32.gmra.mrb[0].mxu0 %v344
        %v885 = vpop.f32.mrb[0].mxu0
        %v886 = vadd.f32 %v801, %v885
        %v887 = vpop.f32.mrb[0].mxu0
        %888 = vmatprep.mubr.f32.mxu0 %v404
        %889 = vmatmul.mubr.f32.gmra.mrb[0].mxu0 %v346
        %v890 = vpop.f32.mrb[0].mxu0
        %v891 = vadd.f32 %v806, %v890
        %v892 = vpop.f32.mrb[0].mxu0
        %893 = vdwg.mxu0
        %894 = vmatprep.subr.mxu0 0.0
        %895 = vmatpush1.msra.mxu0 %v538
        %896 = vmatprep.subr.mxu0 0.0
        %897 = vmatpush1.msra.mxu0 %v539
        %898 = vmatprep.subr.mxu0 0.0
        %899 = vmatpush1.msra.mxu0 %v540
        %900 = vmatprep.subr.mxu0 0.0
        %901 = vmatpush1.msra.mxu0 %v541
        %902 = vmatprep.subr.mxu0 0.0
        %903 = vmatpush1.msra.mxu0 %v542
        %904 = vmatprep.subr.mxu0 0.0
        %905 = vmatpush1.msra.mxu0 %v543
        %906 = vmatprep.subr.mxu0 0.0
        %907 = vmatpush1.msra.mxu0 %v544
        %908 = vmatprep.subr.mxu0 0.0
        %909 = vmatpush1.msra.mxu0 %v545
        %910 = vmatprep.subr.mxu0 0.0
        %911 = vmatpush1.msra.mxu0 %v546
        %912 = vmatprep.subr.mxu0 0.0
        %913 = vmatpush1.msra.mxu0 %v547
        %914 = vmatprep.subr.mxu0 0.0
        %915 = vmatpush1.msra.mxu0 %v548
        %916 = vmatprep.subr.mxu0 0.0
        %917 = vmatpush1.msra.mxu0 %v549
        %918 = vmatprep.subr.mxu0 0.0
        %919 = vmatpush1.msra.mxu0 %v550
        %920 = vmatprep.subr.mxu0 0.0
        %921 = vmatpush1.msra.mxu0 %v551
        %922 = vmatprep.subr.mxu0 0.0
        %923 = vmatpush1.msra.mxu0 %v552
        %924 = vmatprep.subr.mxu0 0.0
        %925 = vmatpush1.msra.mxu0 %v553
        %926 = vmatprep.subr.mxu0 0.0
        %927 = vmatpush1.msra.mxu0 0.0
        %928 = vmatprep.subr.mxu0 0.0
        %929 = vmatpush1.msra.mxu0 0.0
        %930 = vmatprep.subr.mxu0 0.0
        %931 = vmatpush1.msra.mxu0 0.0
        %932 = vmatprep.subr.mxu0 0.0
        %933 = vmatpush1.msra.mxu0 0.0
        %934 = vmatprep.subr.mxu0 0.0
        %935 = vmatpush1.msra.mxu0 0.0
        %936 = vmatprep.subr.mxu0 0.0
        %937 = vmatpush1.msra.mxu0 0.0
        %938 = vmatprep.subr.mxu0 0.0
        %939 = vmatpush1.msra.mxu0 0.0
        %940 = vmatprep.subr.mxu0 0.0
        %941 = vmatpush1.msra.mxu0 0.0
        %942 = vmatprep.subr.mxu0 0.0
        %943 = vmatpush1.msra.mxu0 0.0
        %944 = vmatprep.subr.mxu0 0.0
        %945 = vmatpush1.msra.mxu0 0.0
        %946 = vmatprep.subr.mxu0 0.0
        %947 = vmatpush1.msra.mxu0 0.0
        %948 = vmatprep.subr.mxu0 0.0
        %949 = vmatpush1.msra.mxu0 0.0
        %950 = vmatprep.subr.mxu0 0.0
        %951 = vmatpush1.msra.mxu0 0.0
        %952 = vmatprep.subr.mxu0 0.0
        %953 = vmatpush1.msra.mxu0 0.0
        %954 = vmatprep.subr.mxu0 0.0
        %955 = vmatpush1.msra.mxu0 0.0
        %956 = vmatprep.subr.mxu0 0.0
        %957 = vmatpush1.msra.mxu0 0.0
        %958 = vmatprep.mubr.f32.mxu0 0.0
        %959 = vmatmul.mubr.f32.gmra.mrb[0].mxu0 %v382
        %v960 = vpop.f32.mrb[0].mxu0
        %v961 = vadd.f32 %v876, %v960
        %v962 = vpop.f32.mrb[0].mxu0
        %963 = vmatprep.mubr.f32.mxu0 0.0
        %964 = vmatmul.mubr.f32.gmra.mrb[0].mxu0 %v385
        %v965 = vpop.f32.mrb[0].mxu0
        %v966 = vadd.f32 %v881, %v965
        %v967 = vpop.f32.mrb[0].mxu0
        %968 = vmatprep.mubr.f32.mxu0 0.0
        %969 = vmatmul.mubr.f32.gmra.mrb[0].mxu0 %v398
        %v970 = vpop.f32.mrb[0].mxu0
        %v971 = vadd.f32 %v886, %v970
        %v972 = vpop.f32.mrb[0].mxu0
        %973 = vmatprep.mubr.f32.mxu0 0.0
        %974 = vmatmul.mubr.f32.gmra.mrb[0].mxu0 %v408
        %v975 = vpop.f32.mrb[0].mxu0
        %v976 = vadd.f32 %v891, %v975
        %v977 = vpop.f32.mrb[0].mxu0
        %978 = vdwg.mxu0
        %979 = vst [vmem:[%s291] sm:$0xff] %v961
        %980 = vst [vmem:[%s291 + $0x8] sm:$0xff] %v966
        %981 = vst [vmem:[%s291 + $0x10] sm:$0xff] %v971
        %982 = vst [vmem:[%s291 + $0x18] sm:$0xff] %v976
        %v983 = vadd.f32 %v961, %v966
        %v984 = vadd.f32 %v983, %v971
        %v985 = vadd.f32 %v984, %v976
        %v986 = vrot.slane %v985, 4
        %v987 = vadd.f32 %v985, %v986
        %v988 = vrot.slane %v987, 2
        %v989 = vadd.f32 %v987, %v988
        %v990 = vrot.slane %v989, 1
        %v991 = vadd.f32 %v989, %v990
        %v992 = vmul.f32 %v961, %v961
        %v993 = vmul.f32 %v966, %v966
        %v994 = vmul.f32 %v971, %v971
        %v995 = vmul.f32 %v976, %v976
        %v996 = vadd.f32 %v992, %v993
        %v997 = vadd.f32 %v996, %v994
        %v998 = vadd.f32 %v997, %v995
        %v999 = vrot.slane %v998, 4
        %v1000 = vadd.f32 %v998, %v999
        %v1001 = vrot.slane %v1000, 2
        %v1002 = vadd.f32 %v1000, %v1001
        %v1003 = vrot.slane %v1002, 1
        %v1004 = vadd.f32 %v1002, %v1003
        %vm1005 = vcmask 1040384
        %v1006 = vsel %vm1005, %v991, %v1004
        %vm1007 = vcmask 1041408
        %v1008 = vsel %vm1007, %v1006, 0.0
        %1009 = vst [vmem:[%s298] sm:$0xff] %v1008
        %s1010 = sand.u32 %s126, 1
        %s1011 = scalar_lea.sflag [#allocation4], %s1010
        %s1012 = sand.u32 %s126, 1
        %s1013 = smul.addr %s1012, 32
        %s1014 = scalar_lea.vmem [#allocation5], %s1013
        %s1015 = sand.u32 %s154, 1
        %s1016 = scalar_lea.sflag [#allocation7], %s1015
        %s1017 = sand.u32 %s154, 1
        %s1018 = smul.addr %s1017, 8
        %s1019 = scalar_lea.vmem [#allocation6], %s1018
        // Predicated region
        $region37: #{tpu_custom_call.1} parent=31 // pred_check
          %p1020 = pneg %p136
        $region38: #{tpu_custom_call.1} parent=31 // pred_check_branch
          %1022 = sbr.rel (%p1020) target = $region40
        $region39: #{tpu_custom_call.1} parent=31 // pred_region
          %s1023 = smul.u32 4, %s28
          %s1025 = ssub.s32 512, 512
          %1026 = vsyncadd %s1011, %s1025
          %s1027 = smul.addr %s27, 8
          %s1028 = sadd.s32 %s1023, %s1027
          %s1029 = smul.addr %s1028, 128
          %s1030 = scalar_lea.hbm %s3, %s1029
          %s1031 = sshll.u32 %s1014, 4
          %s1032 = int_to_ptr.vmem [resolvable:$true] %s1031
          %1037 = dma.vmem_to_hbm [thread:$0]  %s1032, 512, %s1030, %s1011, 128, 128, 8
        $region40: #{tpu_custom_call.1} parent=31 // pred_fallthru
          _
        // Predicated region
        $region41: #{tpu_custom_call.1} parent=31 // pred_check
          %p1038 = pneg %p164
        $region42: #{tpu_custom_call.1} parent=31 // pred_check_branch
          %1040 = sbr.rel (%p1038) target = $region44
        $region43: #{tpu_custom_call.1} parent=31 // pred_region
          %s1042 = ssub.s32 128, 128
          %1043 = vsyncadd %s1016, %s1042
          %s1044 = smul.addr %s27, 2
          %s1045 = sadd.s32 %s28, %s1044
          %s1046 = smul.addr %s1045, 128
          %s1047 = scalar_lea.hbm %s4, %s1046
          %s1049 = sshll.u32 %s1019, 4
          %s1050 = int_to_ptr.vmem [resolvable:$true] %s1049
          %1052 = dma.vmem_to_hbm [thread:$0]  %s1050, 128, %s1047, %s1016
        $region44: #{tpu_custom_call.1} parent=31 // pred_fallthru
          _
      $region32: #{tpu_custom_call.1} parent=5 // pred_fallthru
        _
      %p1053 = scmp.le.s32.totalorder 2, %s18
      // Predicated region
      $region45: #{tpu_custom_call.1} parent=5 // pred_check
        %p1054 = pneg %p1053
      $region46: #{tpu_custom_call.1} parent=5 // pred_check_branch
        %1056 = sbr.rel (%p1054) target = $region48
      $region47: #{tpu_custom_call.1} parent=5 // pred_region
        %s1057 = ssub.s32 %s18, 2
        // Predicated region
        $region49: #{tpu_custom_call.1} parent=47 // pred_check
          %p1058 = pneg %p142
        $region50: #{tpu_custom_call.1} parent=47 // pred_check_branch
          %1060 = sbr.rel (%p1058) target = $region52
        $region51: #{tpu_custom_call.1} parent=47 // pred_region
          %s1061 = sand.u32 %s127, 1
          %s1062 = scalar_lea.sflag [#allocation4], %s1061
          %s1063 = sand.u32 %s127, 1
          %s1064 = smul.addr %s1063, 32
          %s1065 = scalar_lea.vmem [#allocation5], %s1064
          %1066 = dma.done %s1062, 512
        $region52: #{tpu_custom_call.1} parent=47 // pred_fallthru
          _
        // Predicated region
        $region53: #{tpu_custom_call.1} parent=47 // pred_check
          %p1067 = pneg %p170
        $region54: #{tpu_custom_call.1} parent=47 // pred_check_branch
          %1069 = sbr.rel (%p1067) target = $region56
        $region55: #{tpu_custom_call.1} parent=47 // pred_region
          %s1070 = sand.u32 %s155, 1
          %s1071 = scalar_lea.sflag [#allocation7], %s1070
          %s1072 = sand.u32 %s155, 1
          %s1073 = smul.addr %s1072, 8
          %s1074 = scalar_lea.vmem [#allocation6], %s1073
          %1075 = dma.done %s1071, 128
        $region56: #{tpu_custom_call.1} parent=47 // pred_fallthru
          _
      $region48: #{tpu_custom_call.1} parent=5 // pred_fallthru
        _
    $region6: #{tpu_custom_call.1} parent=1 // loop_footer
      %s22 = sadd.s32 1, %s18
    $region7: #{tpu_custom_call.1} parent=1 // loop_footer_branch
      %17 = sbr.rel target = $region3
    $region8: #{tpu_custom_call.1} parent=1 // loop_exit
      _
    %1076 = vsyncpa [#allocation3], 1
    %s1077 = scalar_lea.sflag [#allocation3], 1
    %1078 = vsyncpa %s1077, 1
    %1079 = vsyncpa [#allocation4], 1
    %s1080 = scalar_lea.sflag [#allocation4], 1
    %1081 = vsyncpa %s1080, 1
    %1082 = vsyncpa [#allocation7], 1
    %s1083 = scalar_lea.sflag [#allocation7], 1
    %1084 = vsyncpa %s1083, 1

</llo_original>
